<compile_context>
chip_gen: v7x
topology: tpu7x:2x2x1
jax: 0.10.0
libtpu: 0.0.40
codegen_flags: <defaults>
</compile_context>

<pallas_src>
import functools
import math

import jax
import jax.numpy as jnp
import numpy as np
from jax import lax
from jax.experimental import pallas as pl
from jax.experimental.pallas import tpu as pltpu

_LANE = 128
_SUBLANE = 8


def _round_up(x, m):
    return ((x + m - 1) // m) * m


# --------------------------------------------------------------------------------- #
# Phase 1: streaming fused Gram of [c_i.T ; c_j.T ; ones] contracted over the batch. #
# --------------------------------------------------------------------------------- #
def _gram_kernel(c_ref, g_ref):
    # g_ref holds this core-split's partial Gram; the batch axis (grid axis 1) is a
    # reduction, so init once per core-split and accumulate into the VMEM-resident block.
    @pl.when(pl.program_id(1) == 0)
    def _():
        g_ref[...] = jnp.zeros_like(g_ref)

    c = c_ref[...]                                    # (Kp, tile_b), f32 or bf16
    # Contract the minor/lane (batch) axis of both operands: G += c @ c^T on the MXU.
    g_ref[...] += lax.dot_general(
        c, c, (((1,), (1,)), ((), ())), preferred_element_type=jnp.float32)


# --------------------------------------------------------------------------------- #
# Phase 2: one-shot O(K^2) finalize on the summed Gram.                              #
# --------------------------------------------------------------------------------- #
def _finalize_kernel(g_ref, out_ref, *, class_num, temperature, kp, core_splits):
    K = class_num
    N = 2 * K
    inv_T = 1.0 / float(temperature)
    logK = math.log(float(K))

    gall = g_ref[...]                                 # (core_splits * Kp, Kp) f32
    g = gall[0:kp, :]
    for s in range(1, core_splits):                   # sum per-core partial Grams
        g = g + gall[s * kp:(s + 1) * kp, :]

    # ---- entropy regularizer ne_i + ne_j (batch sums come from the `ones` row) ----
    p_i = g[N:N + 1, 0:K]                             # (1, K) = c_i.sum(0)
    p_j = g[N:N + 1, K:N]                             # (1, K) = c_j.sum(0)
    p_i = p_i / jnp.sum(p_i, axis=1, keepdims=True)
    p_j = p_j / jnp.sum(p_j, axis=1, keepdims=True)
    ne_i = logK + jnp.sum(p_i * jnp.log(jnp.maximum(p_i, 1e-30)), axis=1, keepdims=True)
    ne_j = logK + jnp.sum(p_j * jnp.log(jnp.maximum(p_j, 1e-30)), axis=1, keepdims=True)

    # ---- (2K, 2K) cosine similarity / T from the Gram (multiplies only) ----
    gN = g[0:N, 0:N]
    row_idx = lax.broadcasted_iota(jnp.int32, (N, N), 0)
    col_idx = lax.broadcasted_iota(jnp.int32, (N, N), 1)
    diag = row_idx == col_idx
    partner = jnp.abs(row_idx - col_idx) == K

    nsq = jnp.where(diag, gN, 0.0)                    # squared norms live on the diagonal
    inv_col = lax.rsqrt(jnp.maximum(jnp.sum(nsq, axis=1, keepdims=True), 1e-16)) * inv_T
    inv_row = lax.rsqrt(jnp.maximum(jnp.sum(nsq, axis=0, keepdims=True), 1e-16))
    sim = gN * inv_col * inv_row                      # cosine / temperature

    # positives: sum over all 2K rows of sim[r, partner(r)]
    pos_sum = jnp.sum(jnp.sum(jnp.where(partner, sim, 0.0), axis=1, keepdims=True),
                      axis=0, keepdims=True)          # (1, 1)

    # row-wise logsumexp with the self-similarity (diagonal) excluded
    sim_ex = jnp.where(diag, jnp.float32(-1e30), sim)
    m = jnp.max(sim_ex, axis=1, keepdims=True)        # (N, 1)
    lse = m + jnp.log(jnp.sum(jnp.exp(sim_ex - m), axis=1, keepdims=True))
    lse_sum = jnp.sum(lse, axis=0, keepdims=True)     # (1, 1)

    ce_mean = (lse_sum - pos_sum) * (1.0 / float(N))
    out_ref[...] = ce_mean + ne_i + ne_j              # (1,1) VMEM store, runs once


def _derive_tile_b(kp, batch, dsize):
    """Largest lane tile whose double-buffered input stream fits a v7x-safe VMEM budget."""
    budget = 24 * 1024 * 1024                         # double-buffered input stream bytes
    t = budget // (2 * kp * dsize)
    t = min(t, 32768, _round_up(batch, _LANE))        # no point tiling beyond the batch
    return max(_LANE, (t // _LANE) * _LANE)


def cluster_loss(c_i, c_j, class_num, temperature, *, tile_b=None,
                 stream_dtype=None, core_splits=2):
    """Pallas TPU implementation of ClusterLoss.forward(c_i, c_j)."""
    B, K = c_i.shape
    assert K == class_num and c_j.shape == (B, K)
    N = 2 * K
    Kp = _round_up(N + 1, _SUBLANE)                   # 2K class rows + 1 ones row, padded

    sdt = jnp.dtype(stream_dtype) if stream_dtype is not None else jnp.dtype(c_i.dtype)
    dsize = sdt.itemsize
    if tile_b is None:
        tile_b = _derive_tile_b(Kp, B, dsize)
    tile_b = max(_LANE, _round_up(int(tile_b), _LANE))

    Bp = _round_up(B, core_splits * tile_b)
    steps = Bp // (core_splits * tile_b)

    # Fused lane-dense operand: classes on sublanes, batch on lanes.  Zero-padded batch
    # columns and class rows contribute nothing to the Gram or to the `ones`-row sums.
    ones = jnp.ones((1, B), c_i.dtype)
    c = jnp.concatenate([c_i.T, c_j.T, ones], axis=0)            # (2K+1, B)
    c = jnp.pad(c, ((0, Kp - (N + 1)), (0, Bp - B))).astype(sdt)

    # Explicit VMEM budget: double-buffered input block + double-buffered Gram + slack.
    vmem_limit = int(max(2 * Kp * tile_b * dsize + 2 * Kp * Kp * 4 + (4 << 20), 16 << 20))

    gram = pl.pallas_call(
        _gram_kernel,
        out_shape=jax.ShapeDtypeStruct((core_splits * Kp, Kp), jnp.float32),
        grid_spec=pltpu.PrefetchScalarGridSpec(
            num_scalar_prefetch=0,
            grid=(core_splits, steps),                # (core split, batch reduction)
            in_specs=[pl.BlockSpec((Kp, tile_b), lambda cs, s: (0, cs * steps + s))],
            out_specs=pl.BlockSpec((Kp, Kp), lambda cs, s: (cs, 0)),
        ),
        compiler_params=pltpu.CompilerParams(
            dimension_semantics=("parallel", "arbitrary"),
            vmem_limit_bytes=vmem_limit,
        ),
    )(c)

    out = pl.pallas_call(
        functools.partial(_finalize_kernel, class_num=K, temperature=float(temperature),
                          kp=Kp, core_splits=core_splits),
        out_shape=jax.ShapeDtypeStruct((1, 1), jnp.float32),
        grid_spec=pltpu.PrefetchScalarGridSpec(
            num_scalar_prefetch=0,
            grid=(1,),
            in_specs=[pl.BlockSpec((core_splits * Kp, Kp), lambda i: (0, 0))],
            out_specs=pl.BlockSpec((1, 1), lambda i: (0, 0)),
        ),
    )(gram)
    return out[0, 0]


def cluster_loss_ref(c_i, c_j, class_num, temperature):
    """Pure-JAX reference mirroring the PyTorch forward."""
    K = class_num
    N = 2 * K
    p_i = c_i.sum(0)
    p_i = p_i / p_i.sum()
    ne_i = jnp.log(float(K)) + (p_i * jnp.log(p_i)).sum()
    p_j = c_j.sum(0)
    p_j = p_j / p_j.sum()
    ne_j = jnp.log(float(K)) + (p_j * jnp.log(p_j)).sum()

    c = jnp.concatenate([c_i.T, c_j.T], axis=0)                  # (N, B)
    norms = jnp.linalg.norm(c, axis=1)
    sim = jnp.dot(c, c.T, precision=jax.lax.Precision.HIGHEST)
    sim = sim / jnp.maximum(norms[:, None] * norms[None, :], 1e-8) / temperature

    idx = jnp.arange(N)
    partner = jnp.where(idx < K, idx + K, idx - K)
    pos = sim[idx, partner]
    sim_ex = jnp.where(jnp.eye(N, dtype=bool), -jnp.inf, sim)
    lse = jax.scipy.special.logsumexp(sim_ex, axis=1)
    ce = jnp.sum(lse - pos)
    return ce / N + ne_i + ne_j


if __name__ == "__main__":
    class_num = 16
    temperature = 0.5
    key = jax.random.PRNGKey(0)

    # ---- primary check: small batch, f32 streaming (single grid step per core split) ----
    k1, k2 = jax.random.split(key)
    c_i = jax.nn.softmax(jax.random.normal(k1, (32, class_num), jnp.float32), axis=-1)
    c_j = jax.nn.softmax(jax.random.normal(k2, (32, class_num), jnp.float32), axis=-1)
    loss = jax.block_until_ready(cluster_loss(c_i, c_j, class_num, temperature))
    ref = jax.block_until_ready(cluster_loss_ref(c_i, c_j, class_num, temperature))
    np.testing.assert_allclose(np.asarray(loss), np.asarray(ref), rtol=2e-3, atol=2e-3)

    # ---- multi-step grid check: batch > core_splits * tile_b exercises init/accumulate ----
    k3, k4 = jax.random.split(k2)
    c_i2 = jax.nn.softmax(jax.random.normal(k3, (640, class_num), jnp.float32), axis=-1)
    c_j2 = jax.nn.softmax(jax.random.normal(k4, (640, class_num), jnp.float32), axis=-1)
    loss2 = jax.block_until_ready(
        cluster_loss(c_i2, c_j2, class_num, temperature, tile_b=128))
    ref2 = jax.block_until_ready(cluster_loss_ref(c_i2, c_j2, class_num, temperature))
    np.testing.assert_allclose(np.asarray(loss2), np.asarray(ref2), rtol=2e-3, atol=2e-3)

    # ---- bf16 streaming check (halves HBM bytes; accumulation stays f32) ----
    loss3 = jax.block_until_ready(
        cluster_loss(c_i, c_j, class_num, temperature, stream_dtype=jnp.bfloat16))
    np.testing.assert_allclose(np.asarray(loss3), np.asarray(ref), rtol=5e-2, atol=5e-2)

    print("KERNEL_OK")
</pallas_src>

<mosaic_0001>
module attributes {stable_mosaic.version = 11 : i64} {
  func.func @_gram_kernel(%arg0: i32, %arg1: i32, %arg2: memref<40x128xf32, #tpu.memory_space<vmem>>, %arg3: memref<40x40xf32, #tpu.memory_space<vmem>>) attributes {dimension_semantics = [#tpu.dimension_semantics<parallel>, #tpu.dimension_semantics<arbitrary>], iteration_bounds = array<i64: 2, 1>, scalar_prefetch = 0 : i64, scratch_operands = 0 : i64, tpu.core_type = #tpu.core_type<tc>, window_params = [{transform_indices = @transform_0, window_bounds = array<i64: 40, 128>}, {transform_indices = @transform_1, window_bounds = array<i64: 40, 40>}]} {
    %c0_i32 = arith.constant 0 : i32
    %0 = arith.cmpi eq, %arg1, %c0_i32 : i32
    %1 = arith.extui %0 : i1 to i32
    %c0_i32_0 = arith.constant 0 : i32
    %2 = arith.cmpi ne, %1, %c0_i32_0 : i32
    scf.if %2 {
      %cst_6 = arith.constant 0.000000e+00 : f32
      %8 = vector.broadcast %cst_6 : f32 to vector<40x40xf32>
      %c0_7 = arith.constant 0 : index
      %c0_8 = arith.constant 0 : index
      %9 = vector.load %arg3[%c0_7, %c0_8] : memref<40x40xf32, #tpu.memory_space<vmem>>, vector<40x40xf32>
      tpu.vector_store %arg3[%c0_7, %c0_8], %8 {strides = array<i32>} : memref<40x40xf32, #tpu.memory_space<vmem>>, vector<40x40xf32>,
    } else {
    }
    %c0 = arith.constant 0 : index
    %c0_1 = arith.constant 0 : index
    %3 = vector.load %arg2[%c0, %c0_1] : memref<40x128xf32, #tpu.memory_space<vmem>>, vector<40x128xf32>
    %c0_2 = arith.constant 0 : index
    %c0_3 = arith.constant 0 : index
    %4 = vector.load %arg3[%c0_2, %c0_3] : memref<40x40xf32, #tpu.memory_space<vmem>>, vector<40x40xf32>
    %cst = arith.constant dense<0.000000e+00> : vector<40x40xf32>
    %5 = tpu.matmul %3, %3, %cst {dimension_numbers = #tpu.dot_dimension_numbers<[1], [1], [0], [0], [0, 0, 1, 0], [], []>} : vector<40x128xf32>, vector<40x128xf32>, vector<40x40xf32> -> vector<40x40xf32>
    %6 = arith.addf %4, %5 : vector<40x40xf32>
    %c0_4 = arith.constant 0 : index
    %c0_5 = arith.constant 0 : index
    %7 = vector.load %arg3[%c0_4, %c0_5] : memref<40x40xf32, #tpu.memory_space<vmem>>, vector<40x40xf32>
    tpu.vector_store %arg3[%c0_4, %c0_5], %6 {strides = array<i32>} : memref<40x40xf32, #tpu.memory_space<vmem>>, vector<40x40xf32>,
    return
  }
  func.func @transform_0(%arg0: i32, %arg1: i32) -> (i32, i32) {
    %c1_i32 = arith.constant 1 : i32
    %0 = arith.muli %arg0, %c1_i32 : i32
    %1 = arith.addi %0, %arg1 : i32
    %c0_i32 = arith.constant 0 : i32
    %c0_i32_0 = arith.constant 0 : i32
    return %c0_i32, %1 : i32, i32
  }
  func.func @transform_1(%arg0: i32, %arg1: i32) -> (i32, i32) {
    %c0_i32 = arith.constant 0 : i32
    %c0_i32_0 = arith.constant 0 : i32
    return %arg0, %c0_i32 : i32, i32
  }
}

</mosaic_0001>

<llo_original>
// kernel: tpu_custom_call.1
$region0: #{tpu_custom_call.1}
  #allocation0 [shape = 'u32[]', space=smem, size = 0x4, offset = 0x4, fixed_abs, tag = 'smem constant byte address 0x4 - core index']
  #allocation1 [shape = 'u32[144,128]{1,0:T(1,128)}', space=vmem, size = 0x12000, scoped, tag = 'internal scratch']
  %s0 = inlined_call_operand.hbm [shape: f32[40,256], index: 0, kind: input, shape index: {}]
  %s1 = inlined_call_operand.vmem [shape: f32[80,40], index: 1, kind: output, shape index: {}]
  %s2 = sld [smem:[#allocation0]]
  $region45: #{tpu_custom_call.1} parent=0
    _
  %s4 = ssub.s32 1, %s2
  %s5 = scalar_select 0, %s4, %s2
  $region1: #{tpu_custom_call.1} parent=0
    #allocation2 [shape = 'u8[40960]{0}', space=vmem, size = 0xa000, scoped, tag = 'input window, operand 0']
    #allocation3 [shape = 's32[2]{0}', space=sflag, size = 0x8, scoped, tag = 'scoped memory for tpu_custom_call.1']
    %6 = vsyncpa [#allocation3], 0
    %s7 = scalar_lea.sflag [#allocation3], 1
    %8 = vsyncpa %s7, 0
    loop: start=0, step=1, limit=4
    $region2: #{tpu_custom_call.1} parent=1 // loop_pre_header
      _
    $region3: #{tpu_custom_call.1} parent=1 // loop_header
      %s10 = sphi 0, %s14
      %p11 = scmp.ge.s32.totalorder %s10, 4
      %s17 = sphi 0, %s29
      %s18 = sphi 0, %s25
      %s19 = sphi 0, %s17
      %s20 = sphi 0, %s18
      %s21 = sphi 0, %s19
      %s22 = sphi 0, %s20
      %s34 = sphi 0, %s36
      %s37 = sphi 0, %s34
      %s38 = sphi 0, %s37
      %s54 = sphi 0, %s38
      %s60 = sphi 0, %s62
      %s63 = sphi 0, %s60
      %s64 = sphi 0, %s63
      %s80 = sphi 0, %s64
    $region4: #{tpu_custom_call.1} parent=1 // loop_header_branch
      %13 = sbr.rel (%p11) target = $region8
    $region5: #{tpu_custom_call.1} parent=1 // loop_body
      %s15 = ssub.s32 %s10, 1
      %s16 = ssub.s32 %s10, 2
      %s23 = sadd.s32 1, %s18
      %p24 = scmp.ge.s32.totalorder %s23, 1
      %s25 = scalar_select %p24, 0, %s23
      %s26 = sadd.s32 1, %s17
      %s27 = scalar_select %p24, %s26, %s17
      %p28 = scmp.ge.s32.totalorder %s27, 2
      %s29 = scalar_select %p28, 0, %s27
      %s30 = sadd.s32 %s17, %s18
      %s31 = sadd.s32 %s29, %s25
      %s32 = ssub.s32 %s30, %s31
      %p33 = scmp.eq.s32.totalorder %s32, 0
      %s35 = sadd.s32 %s34, 1
      %s36 = scalar_select %p33, %s34, %s35
      %p39 = pneg %p33
      %p40 = scmp.eq.s32.totalorder %s10, 1
      %p41 = por %p39, %p40
      %p42 = scmp.ne.s32.totalorder %s34, %s37
      %p43 = scmp.eq.s32.totalorder %s10, 0
      %p44 = por %p42, %p43
      %p45 = scmp.ne.s32.totalorder %s34, %s37
      %p46 = scmp.eq.s32.totalorder %s15, 1
      %p47 = por %p45, %p46
      %p48 = scmp.ne.s32.totalorder %s37, %s38
      %p49 = scmp.eq.s32.totalorder %s15, 0
      %p50 = por %p48, %p49
      %p51 = scmp.ne.s32.totalorder %s37, %s38
      %p52 = scmp.eq.s32.totalorder %s16, 1
      %p53 = por %p51, %p52
      %p55 = scmp.ne.s32.totalorder %s38, %s54
      %p56 = scmp.eq.s32.totalorder %s16, 0
      %p57 = por %p55, %p56
      %s58 = ssub.s32 %s17, %s29
      %p59 = scmp.eq.s32.totalorder %s58, 0
      %s61 = sadd.s32 %s60, 1
      %s62 = scalar_select %p59, %s60, %s61
      %p65 = pneg %p59
      %p66 = scmp.eq.s32.totalorder %s10, 1
      %p67 = por %p65, %p66
      %p68 = scmp.ne.s32.totalorder %s60, %s63
      %p69 = scmp.eq.s32.totalorder %s10, 0
      %p70 = por %p68, %p69
      %p71 = scmp.ne.s32.totalorder %s60, %s63
      %p72 = scmp.eq.s32.totalorder %s15, 1
      %p73 = por %p71, %p72
      %p74 = scmp.ne.s32.totalorder %s63, %s64
      %p75 = scmp.eq.s32.totalorder %s15, 0
      %p76 = por %p74, %p75
      %p77 = scmp.ne.s32.totalorder %s63, %s64
      %p78 = scmp.eq.s32.totalorder %s16, 1
      %p79 = por %p77, %p78
      %p81 = scmp.ne.s32.totalorder %s64, %s80
      %p82 = scmp.eq.s32.totalorder %s16, 0
      %p83 = por %p81, %p82
      %p84 = scmp.le.s32.totalorder 1, %s10
      %p85 = scmp.lt.s32.totalorder %s10, 3
      %p86 = pnand %p84, %p85
      %p87 = pneg %p86
      // Predicated region
      $region9: #{tpu_custom_call.1} parent=5 // pred_check
        _
      $region10: #{tpu_custom_call.1} parent=5 // pred_check_branch
        %89 = sbr.rel (%p86) target = $region12
      $region11: #{tpu_custom_call.1} parent=5 // pred_region
        %s90 = ssub.s32 %s10, 1
      $region12: #{tpu_custom_call.1} parent=5 // pred_fallthru
        _
      %p91 = scmp.lt.s32.totalorder %s10, 2
      // Predicated region
      $region13: #{tpu_custom_call.1} parent=5 // pred_check
        %p92 = pneg %p91
      $region14: #{tpu_custom_call.1} parent=5 // pred_check_branch
        %94 = sbr.rel (%p92) target = $region16
      $region15: #{tpu_custom_call.1} parent=5 // pred_region
        // Predicated region
        $region17: #{tpu_custom_call.1} parent=15 // pred_check
          %p95 = pneg %p44
        $region18: #{tpu_custom_call.1} parent=15 // pred_check_branch
          %97 = sbr.rel (%p95) target = $region20
        $region19: #{tpu_custom_call.1} parent=15 // pred_region
          %s98 = sand.u32 %s34, 1
          %s99 = scalar_lea.sflag [#allocation3], %s98
          %s100 = sand.u32 %s34, 1
          %s101 = smul.addr %s100, 40
          %s102 = scalar_lea.vmem [#allocation2], %s101
          %s103 = sadd.s32 %s17, %s18
          %s105 = ssub.s32 640, 640
          %106 = vsyncadd %s99, %s105
          %s107 = smul.addr %s103, 128
          %s108 = scalar_lea.hbm %s0, %s107
          %s109 = sshll.u32 %s102, 4
          %s110 = int_to_ptr.vmem [resolvable:$true] %s109
          %115 = dma.hbm_to_vmem [thread:$0]  %s108, 640, %s110, %s99, 256, 128, 8
        $region20: #{tpu_custom_call.1} parent=15 // pred_fallthru
          _
      $region16: #{tpu_custom_call.1} parent=5 // pred_fallthru
        _
      %p116 = scmp.le.s32.totalorder 1, %s10
      %p117 = scmp.lt.s32.totalorder %s10, 3
      %p118 = pnand %p116, %p117
      %p119 = pneg %p118
      // Predicated region
      $region21: #{tpu_custom_call.1} parent=5 // pred_check
        _
      $region22: #{tpu_custom_call.1} parent=5 // pred_check_branch
        %121 = sbr.rel (%p118) target = $region24
      $region23: #{tpu_custom_call.1} parent=5 // pred_region
        %s122 = ssub.s32 %s10, 1
        %s123 = sand.u32 %s37, 1
        %s124 = scalar_lea.sflag [#allocation3], %s123
        %s125 = sand.u32 %s37, 1
        %s126 = smul.addr %s125, 40
        %s127 = scalar_lea.vmem [#allocation2], %s126
        // Predicated region
        $region25: #{tpu_custom_call.1} parent=23 // pred_check
          %p128 = pneg %p50
        $region26: #{tpu_custom_call.1} parent=23 // pred_check_branch
          %130 = sbr.rel (%p128) target = $region28
        $region27: #{tpu_custom_call.1} parent=23 // pred_region
          %131 = dma.done %s124, 640
        $region28: #{tpu_custom_call.1} parent=23 // pred_fallthru
          _
        %s132 = sand.u32 %s37, 1
        %s133 = scalar_lea.sflag [#allocation3], %s132
        %s134 = sand.u32 %s37, 1
        %s135 = smul.addr %s134, 40
        %s136 = scalar_lea.vmem [#allocation2], %s135
        %p137 = pneg %p50
        %p138 = pneg %p47
        %p139 = pneg %p76
        %p140 = pneg %p73
        %s141 = smul.u32 5, %s19
        %p142 = scmp.lt.s32.totalorder %s141, 9
        %s143 = scalar_select %p142, %s141, 9
        %s144 = smul.addr %s143, 8
        %s145 = scalar_lea.vmem %s1, %s144
        %s146 = sadd.s32 %s19, %s20
        %s147 = smul.u32 5, %s19
        %p148 = scmp.lt.s32.totalorder %s147, 9
        %s149 = scalar_select %p148, %s147, 9
        %s150 = smul.addr %s149, 8
        %s151 = scalar_lea.vmem %s1, %s150
        %s152 = smul.u32 5, %s19
        %p153 = scmp.eq.s32.totalorder %s20, 0
        // Predicated region
        $region29: #{tpu_custom_call.1} parent=23 // pred_check
          %p154 = pneg %p153
        $region30: #{tpu_custom_call.1} parent=23 // pred_check_branch
          %156 = sbr.rel (%p154) target = $region32
        $region31: #{tpu_custom_call.1} parent=23 // pred_region
          %vm157 = vcmask 326656
          %158 = vst.msk [vmem:[%s151] sm:$0xff] %vm157, 0.0
          %159 = vst.msk [vmem:[%s151 + $0x8] sm:$0xff] %vm157, 0.0
          %160 = vst.msk [vmem:[%s151 + $0x10] sm:$0xff] %vm157, 0.0
          %161 = vst.msk [vmem:[%s151 + $0x18] sm:$0xff] %vm157, 0.0
          %162 = vst.msk [vmem:[%s151 + $0x20] sm:$0xff] %vm157, 0.0
        $region32: #{tpu_custom_call.1} parent=23 // pred_fallthru
          _
        %v163 = vld [vmem:[%s127] sm:$0xff]
        %v164 = vld [vmem:[%s127 + $0x8] sm:$0xff]
        %v165 = vld [vmem:[%s127 + $0x10] sm:$0xff]
        %v166 = vld [vmem:[%s127 + $0x18] sm:$0xff]
        %v167 = vld [vmem:[%s127 + $0x20] sm:$0xff]
        %v168 = vld [vmem:[%s151] sm:$0xff]
        %v169 = vld [vmem:[%s151 + $0x8] sm:$0xff]
        %v170 = vld [vmem:[%s151 + $0x10] sm:$0xff]
        %v171 = vld [vmem:[%s151 + $0x18] sm:$0xff]
        %v172 = vld [vmem:[%s151 + $0x20] sm:$0xff]
        %173 = vmatprep.subr.mxu0 0.0
        %174 = vmatpush1.xpose.msra.mxu0 %v163
        %175 = vmatprep.subr.mxu0 0.0
        %176 = vmatpush1.xpose.msra.mxu0 %v164
        %177 = vmatprep.subr.mxu0 0.0
        %178 = vmatpush1.xpose.msra.mxu0 %v165
        %179 = vmatprep.subr.mxu0 0.0
        %180 = vmatpush1.xpose.msra.mxu0 %v166
        %181 = vmatprep.subr.mxu0 0.0
        %182 = vmatpush1.xpose.msra.mxu0 %v167
        %183 = vmatprep.subr.mxu0 0.0
        %184 = vmatpush1.xpose.msra.mxu0 0.0
        %185 = vmatprep.subr.mxu0 0.0
        %186 = vmatpush1.xpose.msra.mxu0 0.0
        %187 = vmatprep.subr.mxu0 0.0
        %188 = vmatpush1.xpose.msra.mxu0 0.0
        %189 = vmatprep.subr.mxu0 0.0
        %190 = vmatpush1.xpose.msra.mxu0 0.0
        %191 = vmatprep.subr.mxu0 0.0
        %192 = vmatpush1.xpose.msra.mxu0 0.0
        %193 = vmatprep.subr.mxu0 0.0
        %194 = vmatpush1.xpose.msra.mxu0 0.0
        %195 = vmatprep.subr.mxu0 0.0
        %196 = vmatpush1.xpose.msra.mxu0 0.0
        %197 = vmatprep.subr.mxu0 0.0
        %198 = vmatpush1.xpose.msra.mxu0 0.0
        %199 = vmatprep.subr.mxu0 0.0
        %200 = vmatpush1.xpose.msra.mxu0 0.0
        %201 = vmatprep.subr.mxu0 0.0
        %202 = vmatpush1.xpose.msra.mxu0 0.0
        %203 = vmatprep.subr.mxu0 0.0
        %204 = vmatpush1.xpose.msra.mxu0 0.0
        %205 = vmatprep.subr.mxu0 0.0
        %206 = vmatpush1.xpose.msra.mxu0 0.0
        %207 = vmatprep.subr.mxu0 0.0
        %208 = vmatpush1.xpose.msra.mxu0 0.0
        %209 = vmatprep.subr.mxu0 0.0
        %210 = vmatpush1.xpose.msra.mxu0 0.0
        %211 = vmatprep.subr.mxu0 0.0
        %212 = vmatpush1.xpose.msra.mxu0 0.0
        %213 = vmatprep.subr.mxu0 0.0
        %214 = vmatpush1.xpose.msra.mxu0 0.0
        %215 = vmatprep.subr.mxu0 0.0
        %216 = vmatpush1.xpose.msra.mxu0 0.0
        %217 = vmatprep.subr.mxu0 0.0
        %218 = vmatpush1.xpose.msra.mxu0 0.0
        %219 = vmatprep.subr.mxu0 0.0
        %220 = vmatpush1.xpose.msra.mxu0 0.0
        %221 = vmatprep.subr.mxu0 0.0
        %222 = vmatpush1.xpose.msra.mxu0 0.0
        %223 = vmatprep.subr.mxu0 0.0
        %224 = vmatpush1.xpose.msra.mxu0 0.0
        %225 = vmatprep.subr.mxu0 0.0
        %226 = vmatpush1.xpose.msra.mxu0 0.0
        %227 = vmatprep.subr.mxu0 0.0
        %228 = vmatpush1.xpose.msra.mxu0 0.0
        %229 = vmatprep.subr.mxu0 0.0
        %230 = vmatpush1.xpose.msra.mxu0 0.0
        %231 = vmatprep.subr.mxu0 0.0
        %232 = vmatpush1.xpose.msra.mxu0 0.0
        %233 = vmatprep.subr.mxu0 0.0
        %234 = vmatpush1.xpose.msra.mxu0 0.0
        %235 = vmatprep.subr.mxu0 0.0
        %236 = vmatpush1.xpose.msra.mxu0 0.0
        %237 = vmatprep.mubr.f32.mxu0 0.0
        %238 = vmatmul.mubr.f32.gmra.mrb[0].mxu0 %v163
        %v239 = vpop.f32.mrb[0].mxu0
        %v240 = vadd.f32 0.0, %v239
        %v241 = vpop.f32.mrb[0].mxu0
        %242 = vmatprep.mubr.f32.mxu0 0.0
        %243 = vmatmul.mubr.f32.gmra.mrb[0].mxu0 %v164
        %v244 = vpop.f32.mrb[0].mxu0
        %v245 = vadd.f32 0.0, %v244
        %v246 = vpop.f32.mrb[0].mxu0
        %247 = vmatprep.mubr.f32.mxu0 0.0
        %248 = vmatmul.mubr.f32.gmra.mrb[0].mxu0 %v165
        %v249 = vpop.f32.mrb[0].mxu0
        %v250 = vadd.f32 0.0, %v249
        %v251 = vpop.f32.mrb[0].mxu0
        %252 = vmatprep.mubr.f32.mxu0 0.0
        %253 = vmatmul.mubr.f32.gmra.mrb[0].mxu0 %v166
        %v254 = vpop.f32.mrb[0].mxu0
        %v255 = vadd.f32 0.0, %v254
        %v256 = vpop.f32.mrb[0].mxu0
        %257 = vmatprep.mubr.f32.mxu0 0.0
        %258 = vmatmul.mubr.f32.gmra.mrb[0].mxu0 %v167
        %v259 = vpop.f32.mrb[0].mxu0
        %v260 = vadd.f32 0.0, %v259
        %v261 = vpop.f32.mrb[0].mxu0
        %262 = vdwg.mxu0
        %v263 = vadd.f32 %v168, %v240
        %v264 = vadd.f32 %v169, %v245
        %v265 = vadd.f32 %v170, %v250
        %v266 = vadd.f32 %v171, %v255
        %v267 = vadd.f32 %v172, %v260
        %vm268 = vcmask 326656
        %269 = vst.msk [vmem:[%s151] sm:$0xff] %vm268, %v263
        %270 = vst.msk [vmem:[%s151 + $0x8] sm:$0xff] %vm268, %v264
        %271 = vst.msk [vmem:[%s151 + $0x10] sm:$0xff] %vm268, %v265
        %272 = vst.msk [vmem:[%s151 + $0x18] sm:$0xff] %vm268, %v266
        %273 = vst.msk [vmem:[%s151 + $0x20] sm:$0xff] %vm268, %v267
        %s274 = smul.u32 5, %s19
        %p275 = scmp.lt.s32.totalorder %s274, 9
        %s276 = scalar_select %p275, %s274, 9
        %s277 = smul.addr %s276, 8
        %s278 = scalar_lea.vmem %s1, %s277
        // Predicated region
        $region33: #{tpu_custom_call.1} parent=23 // pred_check
          %p279 = pneg %p73
        $region34: #{tpu_custom_call.1} parent=23 // pred_check_branch
          %281 = sbr.rel (%p279) target = $region36
        $region35: #{tpu_custom_call.1} parent=23 // pred_region
          %s282 = smul.u32 5, %s19
        $region36: #{tpu_custom_call.1} parent=23 // pred_fallthru
          _
      $region24: #{tpu_custom_call.1} parent=5 // pred_fallthru
        _
      %p283 = scmp.le.s32.totalorder 2, %s10
      // Predicated region
      $region37: #{tpu_custom_call.1} parent=5 // pred_check
        %p284 = pneg %p283
      $region38: #{tpu_custom_call.1} parent=5 // pred_check_branch
        %286 = sbr.rel (%p284) target = $region40
      $region39: #{tpu_custom_call.1} parent=5 // pred_region
        %s287 = ssub.s32 %s10, 2
        // Predicated region
        $region41: #{tpu_custom_call.1} parent=39 // pred_check
          %p288 = pneg %p79
        $region42: #{tpu_custom_call.1} parent=39 // pred_check_branch
          %290 = sbr.rel (%p288) target = $region44
        $region43: #{tpu_custom_call.1} parent=39 // pred_region
          %s291 = smul.u32 5, %s21
          %p292 = scmp.lt.s32.totalorder %s291, 9
          %s293 = scalar_select %p292, %s291, 9
          %s294 = smul.addr %s293, 8
          %s295 = scalar_lea.vmem %s1, %s294
        $region44: #{tpu_custom_call.1} parent=39 // pred_fallthru
          _
      $region40: #{tpu_custom_call.1} parent=5 // pred_fallthru
        _
    $region6: #{tpu_custom_call.1} parent=1 // loop_footer
      %s14 = sadd.s32 1, %s10
    $region7: #{tpu_custom_call.1} parent=1 // loop_footer_branch
      %9 = sbr.rel target = $region3
    $region8: #{tpu_custom_call.1} parent=1 // loop_exit
      _
    %296 = vsyncpa [#allocation3], 1
    %s297 = scalar_lea.sflag [#allocation3], 1
    %298 = vsyncpa %s297, 1

</llo_original>
